<compile_context>
chip_gen: v6e
topology: v6e:2x2x1
jax: 0.10.0
libtpu: 0.0.40
codegen_flags: <defaults>
</compile_context>

<pallas_src>
import jax
import jax.numpy as jnp
from jax import lax
from jax.experimental import pallas as pl
from jax.experimental.pallas import tpu as pltpu


def _round_up(x, m):
    return ((x + m - 1) // m) * m


def _vmem_budget_bytes():
    """Per-core VMEM capacity minus headroom for Mosaic internal scratch."""
    try:
        cap = pltpu.get_tpu_info().vmem_capacity_bytes
    except Exception:
        cap = 64 * 1024 * 1024          # conservative (v7x) fallback
    return cap, cap - 16 * 1024 * 1024  # >= 16 MiB headroom


def _choose_tm(M, Kp, Np, compute_itemsize, out_itemsize, budget):
    """Largest sublane-aligned tm (<=1024) whose working set fits the budget.

    Working set: double-buffered patches tile + resident (double-buffered)
    weight + double-buffered output tile + bias.
    """
    weight_bytes = 2 * Np * Kp * compute_itemsize + 2 * Np * 4
    for cand in (1024, 512, 256, 128, 64, 32, 16, 8):
        tm = min(cand, _round_up(M, 8))
        need = (2 * tm * Kp * compute_itemsize
                + 2 * tm * Np * out_itemsize
                + weight_bytes)
        if need <= budget:
            return tm, need
    return 8, (2 * 8 * Kp * compute_itemsize
               + 2 * 8 * Np * out_itemsize + weight_bytes)


def _patch_embed_kernel(p_ref, w_ref, b_ref, o_ref):
    # p_ref: (tm, Kp)  flattened-patch tile (compute dtype)
    # w_ref: (Np, Kp)  full weight, E-major, VMEM-resident (contract last dims)
    # b_ref: (1,  Np)  f32 bias
    # o_ref: (tm, Np)  output tile
    acc = lax.dot_general(
        p_ref[...], w_ref[...],
        dimension_numbers=(((1,), (1,)), ((), ())),
        preferred_element_type=jnp.float32)
    o_ref[...] = (acc + b_ref[...]).astype(o_ref.dtype)


def patch_embedding(x, weight, bias, patch_size, compute_dtype=jnp.bfloat16):
    """Forward pass of PatchEmbedding.

    x:      (B, C, H, W)          NCHW, like PyTorch
    weight: (embed_dim, C, P, P)  Conv2d weight
    bias:   (embed_dim,)          Conv2d bias
    returns (B, num_patches, embed_dim) in x.dtype
    """
    B, C, H, W = x.shape
    P = patch_size
    E = weight.shape[0]
    hp, wp = H // P, W // P
    num_patches = hp * wp
    K = C * P * P
    M = B * num_patches

    # Conv2d(stride=P) silently truncates the spatial remainder; mirror that.
    x = x[:, :, :hp * P, :wp * P]

    # --- patch extraction: cast FIRST (halves transpose bytes), then the 6-D
    # transpose to channel-major flattened patches matching the conv weight.
    # TODO(synk): fuse this patchify transpose into the kernel (x in pl.ANY +
    # per-(b, patch-row) slab DMA + in-VMEM reorder on the idle XLU) to remove
    # the remaining full read+write HBM pass over x.
    x_c = x.astype(compute_dtype)
    patches = x_c.reshape(B, C, hp, P, wp, P)
    patches = patches.transpose(0, 2, 4, 1, 3, 5).reshape(M, K)

    w2d = weight.reshape(E, K).astype(compute_dtype)   # reshape only, no transpose

    # --- lane/sublane alignment: K, N padded to multiples of 128, M to tm.
    Kp = max(_round_up(K, 128), 128)
    Np = max(_round_up(E, 128), 128)

    ci = jnp.dtype(compute_dtype).itemsize
    oi = x.dtype.itemsize
    vmem_cap, budget = _vmem_budget_bytes()
    tm, vmem_needed = _choose_tm(M, Kp, Np, ci, oi, budget)
    Mp = _round_up(M, tm)

    if (Mp, Kp) != (M, K):
        patches = jnp.pad(patches, ((0, Mp - M), (0, Kp - K)))
    if (Np, Kp) != (E, K):
        w2d = jnp.pad(w2d, ((0, Np - E), (0, Kp - K)))
    b2d = bias.astype(jnp.float32).reshape(1, E)
    if Np != E:
        b2d = jnp.pad(b2d, ((0, 0), (0, Np - E)))

    grid = (Mp // tm,)                     # 1-D over M; weight stays resident

    cost = pl.CostEstimate(
        flops=2 * M * K * E,               # true flops, not padded
        transcendentals=0,
        bytes_accessed=(Mp * Kp * ci       # patches: read exactly once
                        + Np * Kp * ci     # weight: read once (resident)
                        + Np * 4           # bias
                        + Mp * Np * oi))   # output writeback

    vmem_limit = min(vmem_cap - 8 * 1024 * 1024,
                     vmem_needed + 8 * 1024 * 1024)

    out = pl.pallas_call(
        _patch_embed_kernel,
        out_shape=jax.ShapeDtypeStruct((Mp, Np), x.dtype),
        grid=grid,
        in_specs=[
            pl.BlockSpec((tm, Kp), lambda i: (i, 0)),   # patches tile (streams)
            pl.BlockSpec((Np, Kp), lambda i: (0, 0)),   # full weight (resident)
            pl.BlockSpec((1, Np), lambda i: (0, 0)),    # bias (resident)
        ],
        out_specs=pl.BlockSpec((tm, Np), lambda i: (i, 0)),
        compiler_params=pltpu.CompilerParams(
            dimension_semantics=("parallel",),
            vmem_limit_bytes=int(vmem_limit)),
        cost_estimate=cost,
    )(patches, w2d, b2d)

    return out[:M, :E].reshape(B, num_patches, E)


if __name__ == "__main__":
    # Module defaults: image_size=8, patch_size=2, in_channels=1, embed_dim=64
    image_size, patch_size, in_channels, embed_dim = 8, 2, 1, 64
    batch = 2

    key = jax.random.PRNGKey(0)
    kx, kw, kb = jax.random.split(key, 3)

    x = jax.random.normal(
        kx, (batch, in_channels, image_size, image_size), dtype=jnp.float32)
    # Synthetic params with nn.Conv2d(C, E, P, stride=P) shapes/init range.
    fan_in = in_channels * patch_size * patch_size
    bound = 1.0 / (fan_in ** 0.5)
    weight = jax.random.uniform(
        kw, (embed_dim, in_channels, patch_size, patch_size),
        minval=-bound, maxval=bound, dtype=jnp.float32)
    bias = jax.random.uniform(
        kb, (embed_dim,), minval=-bound, maxval=bound, dtype=jnp.float32)

    out = patch_embedding(x, weight, bias, patch_size)
    out = jax.block_until_ready(out)

    # Pure-JAX reference with the same bf16-rounded inputs and f32 accumulation
    # (mirrors the kernel's MXU numerics).
    hp = wp = image_size // patch_size
    num_patches = hp * wp
    ref_patches = x.reshape(batch, in_channels, hp, patch_size, wp, patch_size)
    ref_patches = ref_patches.transpose(0, 2, 4, 1, 3, 5).reshape(
        batch, num_patches, in_channels * patch_size * patch_size)
    p_bf = ref_patches.astype(jnp.bfloat16).astype(jnp.float32)
    w_bf = weight.reshape(embed_dim, -1).astype(jnp.bfloat16).astype(jnp.float32)
    ref = jnp.einsum("bpk,ek->bpe", p_bf, w_bf,
                     preferred_element_type=jnp.float32) + bias

    assert out.shape == (batch, num_patches, embed_dim)
    assert jnp.allclose(out, ref, atol=1e-3, rtol=1e-3), (
        float(jnp.max(jnp.abs(out - ref))))
    print("KERNEL_OK")
</pallas_src>

<mosaic_0001>
module attributes {stable_mosaic.version = 11 : i64} {
  func.func @_patch_embed_kernel(%arg0: i32, %arg1: memref<32x128xbf16, #tpu.memory_space<vmem>>, %arg2: memref<128x128xbf16, #tpu.memory_space<vmem>>, %arg3: memref<1x128xf32, #tpu.memory_space<vmem>>, %arg4: memref<32x128xf32, #tpu.memory_space<vmem>>) attributes {dimension_semantics = [#tpu.dimension_semantics<parallel>], iteration_bounds = array<i64: 1>, scalar_prefetch = 0 : i64, scratch_operands = 0 : i64, tpu.core_type = #tpu.core_type<tc>, window_params = [{transform_indices = @transform_0, window_bounds = array<i64: 32, 128>}, {pipeline_mode = #tpu.pipeline_mode<synchronous>, transform_indices = @transform_1, window_bounds = array<i64: 128, 128>}, {pipeline_mode = #tpu.pipeline_mode<synchronous>, transform_indices = @transform_2, window_bounds = array<i64: 1, 128>}, {transform_indices = @transform_3, window_bounds = array<i64: 32, 128>}]} {
    %c0 = arith.constant 0 : index
    %c0_0 = arith.constant 0 : index
    %0 = vector.load %arg1[%c0, %c0_0] : memref<32x128xbf16, #tpu.memory_space<vmem>>, vector<32x128xbf16>
    %c0_1 = arith.constant 0 : index
    %c0_2 = arith.constant 0 : index
    %1 = vector.load %arg2[%c0_1, %c0_2] : memref<128x128xbf16, #tpu.memory_space<vmem>>, vector<128x128xbf16>
    %cst = arith.constant dense<0.000000e+00> : vector<32x128xf32>
    %2 = tpu.matmul %0, %1, %cst {dimension_numbers = #tpu.dot_dimension_numbers<[1], [1], [0], [0], [0, 0, 1, 0], [], []>} : vector<32x128xbf16>, vector<128x128xbf16>, vector<32x128xf32> -> vector<32x128xf32>
    %c0_3 = arith.constant 0 : index
    %c0_4 = arith.constant 0 : index
    %3 = vector.load %arg3[%c0_3, %c0_4] : memref<1x128xf32, #tpu.memory_space<vmem>>, vector<1x128xf32>
    %4 = vector.broadcast %3 : vector<1x128xf32> to vector<32x128xf32>
    %5 = arith.addf %2, %4 : vector<32x128xf32>
    %c0_5 = arith.constant 0 : index
    %c0_6 = arith.constant 0 : index
    %6 = vector.load %arg4[%c0_5, %c0_6] : memref<32x128xf32, #tpu.memory_space<vmem>>, vector<32x128xf32>
    tpu.vector_store %arg4[%c0_5, %c0_6], %5 {strides = array<i32>} : memref<32x128xf32, #tpu.memory_space<vmem>>, vector<32x128xf32>,
    return
  }
  func.func @transform_0(%arg0: i32) -> (i32, i32) {
    %c0_i32 = arith.constant 0 : i32
    %c0_i32_0 = arith.constant 0 : i32
    return %arg0, %c0_i32 : i32, i32
  }
  func.func @transform_1(%arg0: i32) -> (i32, i32) {
    %c0_i32 = arith.constant 0 : i32
    %c0_i32_0 = arith.constant 0 : i32
    %c0_i32_1 = arith.constant 0 : i32
    return %c0_i32, %c0_i32_0 : i32, i32
  }
  func.func @transform_2(%arg0: i32) -> (i32, i32) {
    %c0_i32 = arith.constant 0 : i32
    %c0_i32_0 = arith.constant 0 : i32
    %c0_i32_1 = arith.constant 0 : i32
    return %c0_i32, %c0_i32_0 : i32, i32
  }
  func.func @transform_3(%arg0: i32) -> (i32, i32) {
    %c0_i32 = arith.constant 0 : i32
    %c0_i32_0 = arith.constant 0 : i32
    return %arg0, %c0_i32 : i32, i32
  }
}

</mosaic_0001>

<llo_original>
// kernel: tpu_custom_call.1
$region0: #{tpu_custom_call.1}
  #allocation0 [shape = 'u32[]', space=smem, size = 0x4, offset = 0x4, fixed_abs, tag = 'smem constant byte address 0x4 - core index']
  #allocation1 [shape = 'u32[144,128]{1,0:T(1,128)}', space=vmem, size = 0x12000, scoped, tag = 'internal scratch']
  %s0 = inlined_call_operand.hbm [shape: bf16[32,128], index: 0, kind: input, shape index: {}]
  %s1 = inlined_call_operand.hbm [shape: bf16[128,128], index: 1, kind: input, shape index: {}]
  %s2 = inlined_call_operand.vmem [shape: f32[1,128], index: 2, kind: input, shape index: {}]
  %s3 = inlined_call_operand.hbm [shape: f32[32,128], index: 3, kind: output, shape index: {}]
  %s4 = sld [smem:[#allocation0]]
  $region30: #{tpu_custom_call.1} parent=0
    _
  %s6 = ssub.s32 1, %s4
  %s7 = scalar_select 0, %s6, %s4
  $region1: #{tpu_custom_call.1} parent=0
    #allocation2 [shape = 'u8[8192]{0}', space=vmem, size = 0x2000, scoped, tag = 'input window, operand 0, single buffered']
    #allocation3 [shape = 's32[1]{0}', space=sflag, size = 0x4, scoped, tag = 'scoped memory for tpu_custom_call.1']
    #allocation4 [shape = 's32[1]{0}', space=sflag, size = 0x4, scoped, tag = 'scoped memory for tpu_custom_call.1']
    #allocation5 [shape = 'u8[32768]{0}', space=vmem, size = 0x8000, scoped, tag = 'input window, operand 1, single buffered']
    #allocation6 [shape = 's32[1]{0}', space=sflag, size = 0x4, scoped, tag = 'scoped memory for tpu_custom_call.1']
    #allocation7 [shape = 'u8[16384]{0}', space=vmem, size = 0x4000, scoped, tag = 'output window, operand 0, single buffered']
    %8 = vsyncpa [#allocation3], 0
    %9 = vsyncpa [#allocation6], 0
    %10 = vsyncpa [#allocation4], 0
    // Predicated region
    $region2: #{tpu_custom_call.1} parent=1 // pred_check
      _
    $region3: #{tpu_custom_call.1} parent=1 // pred_check_branch
      %12 = sbr.rel (0) target = $region5
    $region4: #{tpu_custom_call.1} parent=1 // pred_region
      %s14 = ssub.s32 256, 256
      %15 = vsyncadd [#allocation3], %s14
      %s16 = sshll.u32 [#allocation2], 4
      %s17 = int_to_ptr.vmem [resolvable:$true] %s16
      %22 = dma.hbm_to_vmem [thread:$0]  %s0, 256, %s17, [#allocation3], 64, 64, 4
    $region5: #{tpu_custom_call.1} parent=1 // pred_fallthru
      _
    // Predicated region
    $region6: #{tpu_custom_call.1} parent=1 // pred_check
      _
    $region7: #{tpu_custom_call.1} parent=1 // pred_check_branch
      %24 = sbr.rel (0) target = $region9
    $region8: #{tpu_custom_call.1} parent=1 // pred_region
      %s26 = ssub.s32 1024, 1024
      %27 = vsyncadd [#allocation6], %s26
      %s28 = sshll.u32 [#allocation5], 4
      %s29 = int_to_ptr.vmem [resolvable:$true] %s28
      %34 = dma.hbm_to_vmem [thread:$0]  %s1, 1024, %s29, [#allocation6], 64, 64, 4
    $region9: #{tpu_custom_call.1} parent=1 // pred_fallthru
      _
    // Predicated region
    $region10: #{tpu_custom_call.1} parent=1 // pred_check
      _
    $region11: #{tpu_custom_call.1} parent=1 // pred_check_branch
      %36 = sbr.rel (0) target = $region13
    $region12: #{tpu_custom_call.1} parent=1 // pred_region
      _
    $region13: #{tpu_custom_call.1} parent=1 // pred_fallthru
      _
    // Predicated region
    $region14: #{tpu_custom_call.1} parent=1 // pred_check
      _
    $region15: #{tpu_custom_call.1} parent=1 // pred_check_branch
      %38 = sbr.rel (0) target = $region17
    $region16: #{tpu_custom_call.1} parent=1 // pred_region
      %39 = dma.done [#allocation3], 256
    $region17: #{tpu_custom_call.1} parent=1 // pred_fallthru
      _
    // Predicated region
    $region18: #{tpu_custom_call.1} parent=1 // pred_check
      _
    $region19: #{tpu_custom_call.1} parent=1 // pred_check_branch
      %41 = sbr.rel (0) target = $region21
    $region20: #{tpu_custom_call.1} parent=1 // pred_region
      %42 = dma.done [#allocation6], 1024
    $region21: #{tpu_custom_call.1} parent=1 // pred_fallthru
      _
    %v44 = vld [vmem:[#allocation2] sm:$0xf]
    %v45 = vld [vmem:[#allocation2 + $0x4] sm:$0xf]
    %v46 = vld [vmem:[#allocation2 + $0x8] sm:$0xf]
    %v47 = vld [vmem:[#allocation2 + $0xc] sm:$0xf]
    %v48 = vld [vmem:[#allocation5] sm:$0xf]
    %v49 = vld [vmem:[#allocation5 + $0x4] sm:$0xf]
    %v50 = vld [vmem:[#allocation5 + $0x8] sm:$0xf]
    %v51 = vld [vmem:[#allocation5 + $0xc] sm:$0xf]
    %v52 = vld [vmem:[#allocation5 + $0x10] sm:$0xf]
    %v53 = vld [vmem:[#allocation5 + $0x14] sm:$0xf]
    %v54 = vld [vmem:[#allocation5 + $0x18] sm:$0xf]
    %v55 = vld [vmem:[#allocation5 + $0x1c] sm:$0xf]
    %v56 = vld [vmem:[#allocation5 + $0x20] sm:$0xf]
    %v57 = vld [vmem:[#allocation5 + $0x24] sm:$0xf]
    %v58 = vld [vmem:[#allocation5 + $0x28] sm:$0xf]
    %v59 = vld [vmem:[#allocation5 + $0x2c] sm:$0xf]
    %v60 = vld [vmem:[#allocation5 + $0x30] sm:$0xf]
    %v61 = vld [vmem:[#allocation5 + $0x34] sm:$0xf]
    %v62 = vld [vmem:[#allocation5 + $0x38] sm:$0xf]
    %v63 = vld [vmem:[#allocation5 + $0x3c] sm:$0xf]
    %v64 = vld [vmem:[%s2] sm:$0x1]
    %v66 = vlaneseq
    %v67 = vshrl.u32 %v66, 7
    %v68 = vsub.s32 0, %v67
    %v69 = vrot.slane %v64, %v68
    %v75 = vunpack.c.l.b16 %v44
    %v76 = vunpack.c.l.b16 %v45
    %v77 = vunpack.c.l.b16 %v46
    %v78 = vunpack.c.l.b16 %v47
    %v79 = vpack.c.b16 %v76, %v75
    %v80 = vpack.c.b16 %v78, %v77
    %v99 = vunpack.c.l.b16 %v48
    %v100 = vunpack.c.l.b16 %v49
    %v101 = vunpack.c.l.b16 %v50
    %v102 = vunpack.c.l.b16 %v51
    %v103 = vunpack.c.l.b16 %v52
    %v104 = vunpack.c.l.b16 %v53
    %v105 = vunpack.c.l.b16 %v54
    %v106 = vunpack.c.l.b16 %v55
    %v107 = vunpack.c.l.b16 %v56
    %v108 = vunpack.c.l.b16 %v57
    %v109 = vunpack.c.l.b16 %v58
    %v110 = vunpack.c.l.b16 %v59
    %v111 = vunpack.c.l.b16 %v60
    %v112 = vunpack.c.l.b16 %v61
    %v113 = vunpack.c.l.b16 %v62
    %v114 = vunpack.c.l.b16 %v63
    %v115 = vpack.c.b16 %v100, %v99
    %v116 = vpack.c.b16 %v102, %v101
    %v117 = vpack.c.b16 %v104, %v103
    %v118 = vpack.c.b16 %v106, %v105
    %v119 = vpack.c.b16 %v108, %v107
    %v120 = vpack.c.b16 %v110, %v109
    %v121 = vpack.c.b16 %v112, %v111
    %v122 = vpack.c.b16 %v114, %v113
    %131 = vmatprep.subr.bf16.mxu0 0
    %132 = vmatpush1.bf16.xpose.msra.mxu0 %v122
    %133 = vmatprep.subr.bf16.mxu0 0
    %134 = vmatpush1.bf16.xpose.msra.mxu0 %v121
    %135 = vmatprep.subr.bf16.mxu0 0
    %136 = vmatpush1.bf16.xpose.msra.mxu0 %v120
    %137 = vmatprep.subr.bf16.mxu0 0
    %138 = vmatpush1.bf16.xpose.msra.mxu0 %v119
    %139 = vmatprep.subr.bf16.mxu0 0
    %140 = vmatpush1.bf16.xpose.msra.mxu0 %v118
    %141 = vmatprep.subr.bf16.mxu0 0
    %142 = vmatpush1.bf16.xpose.msra.mxu0 %v117
    %143 = vmatprep.subr.bf16.mxu0 0
    %144 = vmatpush1.bf16.xpose.msra.mxu0 %v116
    %145 = vmatprep.subr.bf16.mxu0 0
    %146 = vmatpush1.bf16.xpose.msra.mxu0 %v115
    %147 = vmatprep.subr.bf16.mxu0 0
    %148 = vmatpush2.bf16.xpose.msra.mxu0 0
    %149 = vmatprep.subr.bf16.mxu0 0
    %150 = vmatpush2.bf16.xpose.msra.mxu0 0
    %151 = vmatprep.subr.bf16.mxu0 0
    %152 = vmatpush2.bf16.xpose.msra.mxu0 0
    %153 = vmatprep.subr.bf16.mxu0 0
    %154 = vmatpush2.bf16.xpose.msra.mxu0 0
    %155 = vmatprep.subr.bf16.mxu0 0
    %156 = vmatpush2.bf16.xpose.msra.mxu0 0
    %157 = vmatprep.subr.bf16.mxu0 0
    %158 = vmatpush2.bf16.xpose.msra.mxu0 0
    %159 = vmatprep.subr.bf16.mxu0 0
    %160 = vmatpush2.bf16.xpose.msra.mxu0 0
    %161 = vmatprep.subr.bf16.mxu0 0
    %162 = vmatpush2.bf16.xpose.msra.mxu0 0
    %163 = vmatprep.mubr.bf16.mxu0 0
    %164 = vmatmul.mubr.bf16.gmra.mxu0 %v79
    %v165 = vpop.f32.mrf.mxu0
    %v166 = vadd.f32 %v69, %v165
    %v167 = vpop.f32.mrf.mxu0
    %v168 = vpop.f32.mrf.mxu0
    %v169 = vadd.f32 %v69, %v168
    %v170 = vpop.f32.mrf.mxu0
    %171 = vmatprep.mubr.bf16.mxu0 0
    %172 = vmatmul.mubr.bf16.gmra.mxu0 %v80
    %v173 = vpop.f32.mrf.mxu0
    %v174 = vadd.f32 %v69, %v173
    %v175 = vpop.f32.mrf.mxu0
    %v176 = vpop.f32.mrf.mxu0
    %v177 = vadd.f32 %v69, %v176
    %v178 = vpop.f32.mrf.mxu0
    %179 = vdwg.mxu0
    %180 = vst [vmem:[#allocation7] sm:$0xff] %v166
    %181 = vst [vmem:[#allocation7 + $0x8] sm:$0xff] %v169
    %182 = vst [vmem:[#allocation7 + $0x10] sm:$0xff] %v174
    %183 = vst [vmem:[#allocation7 + $0x18] sm:$0xff] %v177
    // Predicated region
    $region22: #{tpu_custom_call.1} parent=1 // pred_check
      _
    $region23: #{tpu_custom_call.1} parent=1 // pred_check_branch
      %185 = sbr.rel (0) target = $region25
    $region24: #{tpu_custom_call.1} parent=1 // pred_region
      %s187 = ssub.s32 512, 512
      %188 = vsyncadd [#allocation4], %s187
      %s189 = sshll.u32 [#allocation7], 4
      %s190 = int_to_ptr.vmem [resolvable:$true] %s189
      %195 = dma.vmem_to_hbm [thread:$0]  %s190, 512, %s3, [#allocation4], 128, 128, 8
    $region25: #{tpu_custom_call.1} parent=1 // pred_fallthru
      _
    // Predicated region
    $region26: #{tpu_custom_call.1} parent=1 // pred_check
      _
    $region27: #{tpu_custom_call.1} parent=1 // pred_check_branch
      %197 = sbr.rel (0) target = $region29
    $region28: #{tpu_custom_call.1} parent=1 // pred_region
      %198 = dma.done [#allocation4], 512
    $region29: #{tpu_custom_call.1} parent=1 // pred_fallthru
      _
    %199 = vsyncpa [#allocation3], 1
    %200 = vsyncpa [#allocation6], 1
    %201 = vsyncpa [#allocation4], 1

</llo_original>
